<compile_context>
chip_gen: v7x
topology: tpu7x:2x2x1
jax: 0.10.0
libtpu: 0.0.40
codegen_flags: <defaults>
</compile_context>

<pallas_src>
import jax
import jax.numpy as jnp
from jax.experimental import pallas as pl
from jax.experimental.pallas import tpu as pltpu


# (fan_in, fan_out) per layer, matching the PyTorch module.
LAYER_DIMS = [(8, 128), (128, 64), (64, 32), (32, 16), (16, 1)]


# --------------------------------------------------------------------------
# Pallas kernel: whole MLP for one batch tile (5 matmuls + bias + ReLU + sigmoid)
# Layout: x_ref [8, TB] bf16, w*_ref [out, in] bf16, b*_ref [out, 1] f32,
#         out_ref [1, TB] f32.
# --------------------------------------------------------------------------
def fcnn8_kernel(x_ref,
                 w0_ref, b0_ref,
                 w1_ref, b1_ref,
                 w2_ref, b2_ref,
                 w3_ref, b3_ref,
                 w4_ref, b4_ref,
                 out_ref):
    x = x_ref[...]  # bf16 [8, TB]

    # 'input': Linear(8 -> 128)   (no activation between 'input' and 'linear1')
    h = jnp.dot(w0_ref[...], x, preferred_element_type=jnp.float32) + b0_ref[...]

    # 'linear1': Linear(128 -> 64) + ReLU
    h = jnp.dot(w1_ref[...], h.astype(jnp.bfloat16),
                preferred_element_type=jnp.float32) + b1_ref[...]
    h = jnp.maximum(h, 0.0)

    # 'linear2': Linear(64 -> 32) + ReLU
    h = jnp.dot(w2_ref[...], h.astype(jnp.bfloat16),
                preferred_element_type=jnp.float32) + b2_ref[...]
    h = jnp.maximum(h, 0.0)

    # 'linear3': Linear(32 -> 16) + ReLU
    h = jnp.dot(w3_ref[...], h.astype(jnp.bfloat16),
                preferred_element_type=jnp.float32) + b3_ref[...]
    h = jnp.maximum(h, 0.0)

    # 'output': Linear(16 -> 1) + Sigmoid (exp + reciprocal both on the EUP)
    z = jnp.dot(w4_ref[...], h.astype(jnp.bfloat16),
                preferred_element_type=jnp.float32) + b4_ref[...]
    out_ref[...] = pl.reciprocal(1.0 + jnp.exp(-z), approx=True)


# --------------------------------------------------------------------------
# Wrapper: batch-tiled grid, batch-on-lanes layout, bf16 matmul operands.
# --------------------------------------------------------------------------
def fcnn8_forward(x, params, *, tb=512):
    """x: [B, 8] float32. params: list of (W[out, in] f32, b[out] f32) (PyTorch layout)."""
    assert tb % 128 == 0, "tile must be lane-dense (multiple of 128)"
    B = x.shape[0]
    num_tiles = (B + tb - 1) // tb
    b_pad = num_tiles * tb

    # Batch-on-lanes, zero-padded to a multiple of TB, bf16 matmul operand.
    xt = jnp.zeros((8, b_pad), jnp.bfloat16)
    xt = xt.at[:, :B].set(x.astype(jnp.bfloat16).T)

    flat = []
    in_specs = [pl.BlockSpec((8, tb), lambda i: (0, i))]      # streamed input tile
    for w, b in params:
        wt = w.astype(jnp.bfloat16)                           # [out, in]
        bt = b.astype(jnp.float32).reshape(-1, 1)             # [out, 1]
        flat.extend([wt, bt])
        # Weights/biases: full-array blocks, same block every step -> VMEM-resident.
        in_specs.append(pl.BlockSpec(wt.shape, lambda i: (0, 0)))
        in_specs.append(pl.BlockSpec(bt.shape, lambda i: (0, 0)))

    flops = 2 * B * sum(fi * fo for fi, fo in LAYER_DIMS)
    weight_bytes = sum(fi * fo * 2 + fo * 4 for fi, fo in LAYER_DIMS)
    cost = pl.CostEstimate(
        flops=flops,
        transcendentals=B,
        bytes_accessed=B * (8 * 2 + 1 * 4) + weight_bytes,
    )

    out = pl.pallas_call(
        fcnn8_kernel,
        out_shape=jax.ShapeDtypeStruct((1, b_pad), jnp.float32),
        grid=(num_tiles,),
        in_specs=in_specs,
        out_specs=pl.BlockSpec((1, tb), lambda i: (0, i)),
        compiler_params=pltpu.CompilerParams(
            dimension_semantics=("parallel",),
            vmem_limit_bytes=32 * 1024 * 1024,
        ),
        cost_estimate=cost,
    )(xt, *flat)

    return out[0, :B].reshape(B, 1)


# --------------------------------------------------------------------------
# Deterministic parameter init (mimics nn.Linear default U(-1/sqrt(in), +1/sqrt(in))).
# Stored PyTorch-native: W [out, in], b [out].
# --------------------------------------------------------------------------
def init_params(key):
    params = []
    for fan_in, fan_out in LAYER_DIMS:
        key, kw, kb = jax.random.split(key, 3)
        bound = 1.0 / (fan_in ** 0.5)
        w = jax.random.uniform(kw, (fan_out, fan_in), jnp.float32,
                               minval=-bound, maxval=bound)
        b = jax.random.uniform(kb, (fan_out,), jnp.float32,
                               minval=-bound, maxval=bound)
        params.append((w, b))
    return params


def reference_forward_f32(x, params):
    """Exact PyTorch-semantics f32 reference: y = x @ W.T + b per layer."""
    (w0, b0), (w1, b1), (w2, b2), (w3, b3), (w4, b4) = params
    h = x @ w0.T + b0
    h = h @ w1.T + b1
    h = jnp.maximum(h, 0.0)
    h = h @ w2.T + b2
    h = jnp.maximum(h, 0.0)
    h = h @ w3.T + b3
    h = jnp.maximum(h, 0.0)
    z = h @ w4.T + b4
    return jax.nn.sigmoid(z)


def reference_forward_bf16(x, params):
    """Plain-JAX reference matching the kernel's bf16-operand / f32-accumulate recipe."""
    h = x.astype(jnp.bfloat16)
    n = len(params)
    for idx, (w, b) in enumerate(params):
        h = jnp.dot(h, w.astype(jnp.bfloat16).T,
                    preferred_element_type=jnp.float32) + b
        if 1 <= idx <= 3:          # ReLU after linear1..linear3 only
            h = jnp.maximum(h, 0.0)
        if idx < n - 1:
            h = h.astype(jnp.bfloat16)
    return jax.nn.sigmoid(h)


if __name__ == "__main__":
    key = jax.random.PRNGKey(0)
    key, kx = jax.random.split(key)

    batch = 8
    x = jax.random.normal(kx, (batch, 8), jnp.float32)
    params = init_params(key)

    out = fcnn8_forward(x, params, tb=256)
    out = jax.block_until_ready(out)
    assert out.shape == (batch, 1)

    ref_bf16 = reference_forward_bf16(x, params)
    ref_f32 = reference_forward_f32(x, params)
    assert jnp.allclose(out, ref_bf16, atol=2e-3, rtol=2e-3), \
        "kernel mismatch vs bf16-matched reference"
    assert jnp.allclose(out, ref_f32, atol=3e-2, rtol=3e-2), \
        "kernel drifted too far from f32 reference"

    print("KERNEL_OK")
</pallas_src>

<mosaic_0001>
module attributes {stable_mosaic.version = 11 : i64} {
  func.func @fcnn8_kernel(%arg0: i32, %arg1: memref<8x256xbf16, #tpu.memory_space<vmem>>, %arg2: memref<128x8xbf16, #tpu.memory_space<vmem>>, %arg3: memref<128x1xf32, #tpu.memory_space<vmem>>, %arg4: memref<64x128xbf16, #tpu.memory_space<vmem>>, %arg5: memref<64x1xf32, #tpu.memory_space<vmem>>, %arg6: memref<32x64xbf16, #tpu.memory_space<vmem>>, %arg7: memref<32x1xf32, #tpu.memory_space<vmem>>, %arg8: memref<16x32xbf16, #tpu.memory_space<vmem>>, %arg9: memref<16x1xf32, #tpu.memory_space<vmem>>, %arg10: memref<1x16xbf16, #tpu.memory_space<vmem>>, %arg11: memref<1x1xf32, #tpu.memory_space<vmem>>, %arg12: memref<1x256xf32, #tpu.memory_space<vmem>>) attributes {dimension_semantics = [#tpu.dimension_semantics<parallel>], iteration_bounds = array<i64: 1>, scalar_prefetch = 0 : i64, scratch_operands = 0 : i64, tpu.core_type = #tpu.core_type<tc>, window_params = [{transform_indices = @transform_0, window_bounds = array<i64: 8, 256>}, {pipeline_mode = #tpu.pipeline_mode<synchronous>, transform_indices = @transform_1, window_bounds = array<i64: 128, 8>}, {pipeline_mode = #tpu.pipeline_mode<synchronous>, transform_indices = @transform_2, window_bounds = array<i64: 128, 1>}, {pipeline_mode = #tpu.pipeline_mode<synchronous>, transform_indices = @transform_3, window_bounds = array<i64: 64, 128>}, {pipeline_mode = #tpu.pipeline_mode<synchronous>, transform_indices = @transform_4, window_bounds = array<i64: 64, 1>}, {pipeline_mode = #tpu.pipeline_mode<synchronous>, transform_indices = @transform_5, window_bounds = array<i64: 32, 64>}, {pipeline_mode = #tpu.pipeline_mode<synchronous>, transform_indices = @transform_6, window_bounds = array<i64: 32, 1>}, {pipeline_mode = #tpu.pipeline_mode<synchronous>, transform_indices = @transform_7, window_bounds = array<i64: 16, 32>}, {pipeline_mode = #tpu.pipeline_mode<synchronous>, transform_indices = @transform_8, window_bounds = array<i64: 16, 1>}, {pipeline_mode = #tpu.pipeline_mode<synchronous>, transform_indices = @transform_9, window_bounds = array<i64: 1, 16>}, {pipeline_mode = #tpu.pipeline_mode<synchronous>, transform_indices = @transform_10, window_bounds = array<i64: 1, 1>}, {transform_indices = @transform_11, window_bounds = array<i64: 1, 256>}]} {
    %c0 = arith.constant 0 : index
    %c0_0 = arith.constant 0 : index
    %0 = vector.load %arg1[%c0, %c0_0] : memref<8x256xbf16, #tpu.memory_space<vmem>>, vector<8x256xbf16>
    %c0_1 = arith.constant 0 : index
    %c0_2 = arith.constant 0 : index
    %1 = vector.load %arg2[%c0_1, %c0_2] : memref<128x8xbf16, #tpu.memory_space<vmem>>, vector<128x8xbf16>
    %cst = arith.constant dense<0.000000e+00> : vector<128x256xf32>
    %2 = tpu.matmul %1, %0, %cst {dimension_numbers = #tpu.dot_dimension_numbers<[1], [0], [0], [1], [0, 0, 1, 1], [], []>} : vector<128x8xbf16>, vector<8x256xbf16>, vector<128x256xf32> -> vector<128x256xf32>
    %c0_3 = arith.constant 0 : index
    %c0_4 = arith.constant 0 : index
    %3 = vector.load %arg3[%c0_3, %c0_4] : memref<128x1xf32, #tpu.memory_space<vmem>>, vector<128x1xf32>
    %4 = vector.broadcast %3 : vector<128x1xf32> to vector<128x256xf32>
    %5 = arith.addf %2, %4 : vector<128x256xf32>
    %c0_5 = arith.constant 0 : index
    %c0_6 = arith.constant 0 : index
    %6 = vector.load %arg4[%c0_5, %c0_6] : memref<64x128xbf16, #tpu.memory_space<vmem>>, vector<64x128xbf16>
    %7 = arith.truncf %5 : vector<128x256xf32> to vector<128x256xbf16>
    %cst_7 = arith.constant dense<0.000000e+00> : vector<64x256xf32>
    %8 = tpu.matmul %6, %7, %cst_7 {dimension_numbers = #tpu.dot_dimension_numbers<[1], [0], [0], [1], [0, 0, 1, 1], [], []>} : vector<64x128xbf16>, vector<128x256xbf16>, vector<64x256xf32> -> vector<64x256xf32>
    %c0_8 = arith.constant 0 : index
    %c0_9 = arith.constant 0 : index
    %9 = vector.load %arg5[%c0_8, %c0_9] : memref<64x1xf32, #tpu.memory_space<vmem>>, vector<64x1xf32>
    %10 = vector.broadcast %9 : vector<64x1xf32> to vector<64x256xf32>
    %11 = arith.addf %8, %10 : vector<64x256xf32>
    %cst_10 = arith.constant 0.000000e+00 : f32
    %12 = vector.broadcast %cst_10 : f32 to vector<64x256xf32>
    %13 = arith.maximumf %11, %12 : vector<64x256xf32>
    %c0_11 = arith.constant 0 : index
    %c0_12 = arith.constant 0 : index
    %14 = vector.load %arg6[%c0_11, %c0_12] : memref<32x64xbf16, #tpu.memory_space<vmem>>, vector<32x64xbf16>
    %15 = arith.truncf %13 : vector<64x256xf32> to vector<64x256xbf16>
    %cst_13 = arith.constant dense<0.000000e+00> : vector<32x256xf32>
    %16 = tpu.matmul %14, %15, %cst_13 {dimension_numbers = #tpu.dot_dimension_numbers<[1], [0], [0], [1], [0, 0, 1, 1], [], []>} : vector<32x64xbf16>, vector<64x256xbf16>, vector<32x256xf32> -> vector<32x256xf32>
    %c0_14 = arith.constant 0 : index
    %c0_15 = arith.constant 0 : index
    %17 = vector.load %arg7[%c0_14, %c0_15] : memref<32x1xf32, #tpu.memory_space<vmem>>, vector<32x1xf32>
    %18 = vector.broadcast %17 : vector<32x1xf32> to vector<32x256xf32>
    %19 = arith.addf %16, %18 : vector<32x256xf32>
    %cst_16 = arith.constant 0.000000e+00 : f32
    %20 = vector.broadcast %cst_16 : f32 to vector<32x256xf32>
    %21 = arith.maximumf %19, %20 : vector<32x256xf32>
    %c0_17 = arith.constant 0 : index
    %c0_18 = arith.constant 0 : index
    %22 = vector.load %arg8[%c0_17, %c0_18] : memref<16x32xbf16, #tpu.memory_space<vmem>>, vector<16x32xbf16>
    %23 = arith.truncf %21 : vector<32x256xf32> to vector<32x256xbf16>
    %cst_19 = arith.constant dense<0.000000e+00> : vector<16x256xf32>
    %24 = tpu.matmul %22, %23, %cst_19 {dimension_numbers = #tpu.dot_dimension_numbers<[1], [0], [0], [1], [0, 0, 1, 1], [], []>} : vector<16x32xbf16>, vector<32x256xbf16>, vector<16x256xf32> -> vector<16x256xf32>
    %c0_20 = arith.constant 0 : index
    %c0_21 = arith.constant 0 : index
    %25 = vector.load %arg9[%c0_20, %c0_21] : memref<16x1xf32, #tpu.memory_space<vmem>>, vector<16x1xf32>
    %26 = vector.broadcast %25 : vector<16x1xf32> to vector<16x256xf32>
    %27 = arith.addf %24, %26 : vector<16x256xf32>
    %cst_22 = arith.constant 0.000000e+00 : f32
    %28 = vector.broadcast %cst_22 : f32 to vector<16x256xf32>
    %29 = arith.maximumf %27, %28 : vector<16x256xf32>
    %c0_23 = arith.constant 0 : index
    %c0_24 = arith.constant 0 : index
    %30 = vector.load %arg10[%c0_23, %c0_24] : memref<1x16xbf16, #tpu.memory_space<vmem>>, vector<1x16xbf16>
    %31 = arith.truncf %29 : vector<16x256xf32> to vector<16x256xbf16>
    %cst_25 = arith.constant dense<0.000000e+00> : vector<1x256xf32>
    %32 = tpu.matmul %30, %31, %cst_25 {dimension_numbers = #tpu.dot_dimension_numbers<[1], [0], [0], [1], [0, 0, 1, 1], [], []>} : vector<1x16xbf16>, vector<16x256xbf16>, vector<1x256xf32> -> vector<1x256xf32>
    %c0_26 = arith.constant 0 : index
    %c0_27 = arith.constant 0 : index
    %33 = vector.load %arg11[%c0_26, %c0_27] : memref<1x1xf32, #tpu.memory_space<vmem>>, vector<1x1xf32>
    %34 = vector.broadcast %33 : vector<1x1xf32> to vector<1x256xf32>
    %35 = arith.addf %32, %34 : vector<1x256xf32>
    %cst_28 = arith.constant 0.000000e+00 : f32
    %36 = vector.broadcast %cst_28 : f32 to vector<1x256xf32>
    %37 = arith.subf %36, %35 : vector<1x256xf32>
    %38 = math.exp %37 : vector<1x256xf32>
    %cst_29 = arith.constant 1.000000e+00 : f32
    %39 = vector.broadcast %cst_29 : f32 to vector<1x256xf32>
    %40 = arith.addf %39, %38 : vector<1x256xf32>
    %41 = tpu.reciprocal %40 {approx = true} : vector<1x256xf32> -> vector<1x256xf32>
    %c0_30 = arith.constant 0 : index
    %c0_31 = arith.constant 0 : index
    %42 = vector.load %arg12[%c0_30, %c0_31] : memref<1x256xf32, #tpu.memory_space<vmem>>, vector<1x256xf32>
    tpu.vector_store %arg12[%c0_30, %c0_31], %41 {strides = array<i32>} : memref<1x256xf32, #tpu.memory_space<vmem>>, vector<1x256xf32>,
    return
  }
  func.func @transform_0(%arg0: i32) -> (i32, i32) {
    %c0_i32 = arith.constant 0 : i32
    %c0_i32_0 = arith.constant 0 : i32
    return %c0_i32, %arg0 : i32, i32
  }
  func.func @transform_1(%arg0: i32) -> (i32, i32) {
    %c0_i32 = arith.constant 0 : i32
    %c0_i32_0 = arith.constant 0 : i32
    %c0_i32_1 = arith.constant 0 : i32
    return %c0_i32, %c0_i32_0 : i32, i32
  }
  func.func @transform_2(%arg0: i32) -> (i32, i32) {
    %c0_i32 = arith.constant 0 : i32
    %c0_i32_0 = arith.constant 0 : i32
    %c0_i32_1 = arith.constant 0 : i32
    return %c0_i32, %c0_i32_0 : i32, i32
  }
  func.func @transform_3(%arg0: i32) -> (i32, i32) {
    %c0_i32 = arith.constant 0 : i32
    %c0_i32_0 = arith.constant 0 : i32
    %c0_i32_1 = arith.constant 0 : i32
    return %c0_i32, %c0_i32_0 : i32, i32
  }
  func.func @transform_4(%arg0: i32) -> (i32, i32) {
    %c0_i32 = arith.constant 0 : i32
    %c0_i32_0 = arith.constant 0 : i32
    %c0_i32_1 = arith.constant 0 : i32
    return %c0_i32, %c0_i32_0 : i32, i32
  }
  func.func @transform_5(%arg0: i32) -> (i32, i32) {
    %c0_i32 = arith.constant 0 : i32
    %c0_i32_0 = arith.constant 0 : i32
    %c0_i32_1 = arith.constant 0 : i32
    return %c0_i32, %c0_i32_0 : i32, i32
  }
  func.func @transform_6(%arg0: i32) -> (i32, i32) {
    %c0_i32 = arith.constant 0 : i32
    %c0_i32_0 = arith.constant 0 : i32
    %c0_i32_1 = arith.constant 0 : i32
    return %c0_i32, %c0_i32_0 : i32, i32
  }
  func.func @transform_7(%arg0: i32) -> (i32, i32) {
    %c0_i32 = arith.constant 0 : i32
    %c0_i32_0 = arith.constant 0 : i32
    %c0_i32_1 = arith.constant 0 : i32
    return %c0_i32, %c0_i32_0 : i32, i32
  }
  func.func @transform_8(%arg0: i32) -> (i32, i32) {
    %c0_i32 = arith.constant 0 : i32
    %c0_i32_0 = arith.constant 0 : i32
    %c0_i32_1 = arith.constant 0 : i32
    return %c0_i32, %c0_i32_0 : i32, i32
  }
  func.func @transform_9(%arg0: i32) -> (i32, i32) {
    %c0_i32 = arith.constant 0 : i32
    %c0_i32_0 = arith.constant 0 : i32
    %c0_i32_1 = arith.constant 0 : i32
    return %c0_i32, %c0_i32_0 : i32, i32
  }
  func.func @transform_10(%arg0: i32) -> (i32, i32) {
    %c0_i32 = arith.constant 0 : i32
    %c0_i32_0 = arith.constant 0 : i32
    %c0_i32_1 = arith.constant 0 : i32
    return %c0_i32, %c0_i32_0 : i32, i32
  }
  func.func @transform_11(%arg0: i32) -> (i32, i32) {
    %c0_i32 = arith.constant 0 : i32
    %c0_i32_0 = arith.constant 0 : i32
    return %c0_i32, %arg0 : i32, i32
  }
}

</mosaic_0001>

<llo_original>
// kernel: tpu_custom_call.1
$region0: #{tpu_custom_call.1}
  #allocation0 [shape = 'u32[]', space=smem, size = 0x4, offset = 0x4, fixed_abs, tag = 'smem constant byte address 0x4 - core index']
  #allocation1 [shape = 'u32[144,128]{1,0:T(1,128)}', space=vmem, size = 0x12000, scoped, tag = 'internal scratch']
  #allocation2 [shape = 'f32[1,1]{1,0:T(1,128)S(1)}', space=vmem, size = 0x200, scoped, tag = 'scoped memory for tpu_custom_call.1']
  %s0 = inlined_call_operand.vmem [shape: bf16[8,256], index: 0, kind: input, shape index: {}]
  %s1 = inlined_call_operand.vmem [shape: bf16[128,8], index: 1, kind: input, shape index: {}]
  %s2 = inlined_call_operand.vmem [shape: f32[128,1], index: 2, kind: input, shape index: {}]
  %s3 = inlined_call_operand.vmem [shape: bf16[64,128], index: 3, kind: input, shape index: {}]
  %s4 = inlined_call_operand.vmem [shape: f32[64,1], index: 4, kind: input, shape index: {}]
  %s5 = inlined_call_operand.vmem [shape: bf16[32,64], index: 5, kind: input, shape index: {}]
  %s6 = inlined_call_operand.vmem [shape: f32[32,1], index: 6, kind: input, shape index: {}]
  %s7 = inlined_call_operand.vmem [shape: bf16[16,32], index: 7, kind: input, shape index: {}]
  %s8 = inlined_call_operand.vmem [shape: f32[16,1], index: 8, kind: input, shape index: {}]
  %s9 = inlined_call_operand.vmem [shape: bf16[1,16], index: 9, kind: input, shape index: {}]
  %s10 = inlined_call_operand.<no memory space> [shape: f32[1,1], index: 10, kind: input, shape index: {}]
  %s11 = inlined_call_operand.hbm [shape: f32[1,256], index: 11, kind: output, shape index: {}]
  %s12 = sld [smem:[#allocation0]]
  $region54: #{tpu_custom_call.1} parent=0
    _
  %s14 = ssub.s32 1, %s12
  %s15 = scalar_select 0, %s14, %s12
  %v16 = vstv %s10
  %17 = vst [vmem:[#allocation2] sm:$0x1] %v16
  $region1: #{tpu_custom_call.1} parent=0
    #allocation3 [shape = 'u8[1024]{0}', space=vmem, size = 0x400, scoped, tag = 'output window, operand 0, single buffered']
    #allocation4 [shape = 's32[1]{0}', space=sflag, size = 0x4, scoped, tag = 'scoped memory for tpu_custom_call.1']
    %18 = vsyncpa [#allocation4], 0
    // Predicated region
    $region2: #{tpu_custom_call.1} parent=1 // pred_check
      _
    $region3: #{tpu_custom_call.1} parent=1 // pred_check_branch
      %20 = sbr.rel (0) target = $region5
    $region4: #{tpu_custom_call.1} parent=1 // pred_region
      _
    $region5: #{tpu_custom_call.1} parent=1 // pred_fallthru
      _
    // Predicated region
    $region6: #{tpu_custom_call.1} parent=1 // pred_check
      _
    $region7: #{tpu_custom_call.1} parent=1 // pred_check_branch
      %22 = sbr.rel (0) target = $region9
    $region8: #{tpu_custom_call.1} parent=1 // pred_region
      _
    $region9: #{tpu_custom_call.1} parent=1 // pred_fallthru
      _
    // Predicated region
    $region10: #{tpu_custom_call.1} parent=1 // pred_check
      _
    $region11: #{tpu_custom_call.1} parent=1 // pred_check_branch
      %24 = sbr.rel (0) target = $region13
    $region12: #{tpu_custom_call.1} parent=1 // pred_region
      _
    $region13: #{tpu_custom_call.1} parent=1 // pred_fallthru
      _
    // Predicated region
    $region14: #{tpu_custom_call.1} parent=1 // pred_check
      _
    $region15: #{tpu_custom_call.1} parent=1 // pred_check_branch
      %26 = sbr.rel (0) target = $region17
    $region16: #{tpu_custom_call.1} parent=1 // pred_region
      _
    $region17: #{tpu_custom_call.1} parent=1 // pred_fallthru
      _
    // Predicated region
    $region18: #{tpu_custom_call.1} parent=1 // pred_check
      _
    $region19: #{tpu_custom_call.1} parent=1 // pred_check_branch
      %28 = sbr.rel (0) target = $region21
    $region20: #{tpu_custom_call.1} parent=1 // pred_region
      _
    $region21: #{tpu_custom_call.1} parent=1 // pred_fallthru
      _
    // Predicated region
    $region22: #{tpu_custom_call.1} parent=1 // pred_check
      _
    $region23: #{tpu_custom_call.1} parent=1 // pred_check_branch
      %30 = sbr.rel (0) target = $region25
    $region24: #{tpu_custom_call.1} parent=1 // pred_region
      _
    $region25: #{tpu_custom_call.1} parent=1 // pred_fallthru
      _
    // Predicated region
    $region26: #{tpu_custom_call.1} parent=1 // pred_check
      _
    $region27: #{tpu_custom_call.1} parent=1 // pred_check_branch
      %32 = sbr.rel (0) target = $region29
    $region28: #{tpu_custom_call.1} parent=1 // pred_region
      _
    $region29: #{tpu_custom_call.1} parent=1 // pred_fallthru
      _
    // Predicated region
    $region30: #{tpu_custom_call.1} parent=1 // pred_check
      _
    $region31: #{tpu_custom_call.1} parent=1 // pred_check_branch
      %34 = sbr.rel (0) target = $region33
    $region32: #{tpu_custom_call.1} parent=1 // pred_region
      _
    $region33: #{tpu_custom_call.1} parent=1 // pred_fallthru
      _
    // Predicated region
    $region34: #{tpu_custom_call.1} parent=1 // pred_check
      _
    $region35: #{tpu_custom_call.1} parent=1 // pred_check_branch
      %36 = sbr.rel (0) target = $region37
    $region36: #{tpu_custom_call.1} parent=1 // pred_region
      _
    $region37: #{tpu_custom_call.1} parent=1 // pred_fallthru
      _
    // Predicated region
    $region38: #{tpu_custom_call.1} parent=1 // pred_check
      _
    $region39: #{tpu_custom_call.1} parent=1 // pred_check_branch
      %38 = sbr.rel (0) target = $region41
    $region40: #{tpu_custom_call.1} parent=1 // pred_region
      _
    $region41: #{tpu_custom_call.1} parent=1 // pred_fallthru
      _
    // Predicated region
    $region42: #{tpu_custom_call.1} parent=1 // pred_check
      _
    $region43: #{tpu_custom_call.1} parent=1 // pred_check_branch
      %40 = sbr.rel (0) target = $region45
    $region44: #{tpu_custom_call.1} parent=1 // pred_region
      _
    $region45: #{tpu_custom_call.1} parent=1 // pred_fallthru
      _
    %v42 = vld [vmem:[%s0] sm:$0xff]
    %v43 = vld [vmem:[%s1] sm:$0xf]
    %v44 = vld [vmem:[%s1 + $0x4] sm:$0xf]
    %v45 = vld [vmem:[%s1 + $0x8] sm:$0xf]
    %v46 = vld [vmem:[%s1 + $0xc] sm:$0xf]
    %v47 = vld [vmem:[%s1 + $0x10] sm:$0xf]
    %v48 = vld [vmem:[%s1 + $0x14] sm:$0xf]
    %v49 = vld [vmem:[%s1 + $0x18] sm:$0xf]
    %v50 = vld [vmem:[%s1 + $0x1c] sm:$0xf]
    %v51 = vld [vmem:[%s1 + $0x20] sm:$0xf]
    %v52 = vld [vmem:[%s1 + $0x24] sm:$0xf]
    %v53 = vld [vmem:[%s1 + $0x28] sm:$0xf]
    %v54 = vld [vmem:[%s1 + $0x2c] sm:$0xf]
    %v55 = vld [vmem:[%s1 + $0x30] sm:$0xf]
    %v56 = vld [vmem:[%s1 + $0x34] sm:$0xf]
    %v57 = vld [vmem:[%s1 + $0x38] sm:$0xf]
    %v58 = vld [vmem:[%s1 + $0x3c] sm:$0xf]
    %v59 = vld [vmem:[%s2] sm:$0xff]
    %v60 = vld [vmem:[%s2 + $0x8] sm:$0xff]
    %v61 = vld [vmem:[%s2 + $0x10] sm:$0xff]
    %v62 = vld [vmem:[%s2 + $0x18] sm:$0xff]
    %v63 = vld [vmem:[%s2 + $0x20] sm:$0xff]
    %v64 = vld [vmem:[%s2 + $0x28] sm:$0xff]
    %v65 = vld [vmem:[%s2 + $0x30] sm:$0xff]
    %v66 = vld [vmem:[%s2 + $0x38] sm:$0xff]
    %v67 = vld [vmem:[%s2 + $0x40] sm:$0xff]
    %v68 = vld [vmem:[%s2 + $0x48] sm:$0xff]
    %v69 = vld [vmem:[%s2 + $0x50] sm:$0xff]
    %v70 = vld [vmem:[%s2 + $0x58] sm:$0xff]
    %v71 = vld [vmem:[%s2 + $0x60] sm:$0xff]
    %v72 = vld [vmem:[%s2 + $0x68] sm:$0xff]
    %v73 = vld [vmem:[%s2 + $0x70] sm:$0xff]
    %v74 = vld [vmem:[%s2 + $0x78] sm:$0xff]
    %76 = vset.pattern.permute.xlu0 0
    %77 = vperm.xlu0 %76, %v59
    %v78 = vpop.permute.xlu0 %77
    %81 = vset.pattern.permute.xlu0 0
    %82 = vperm.xlu0 %81, %v60
    %v83 = vpop.permute.xlu0 %82
    %86 = vset.pattern.permute.xlu0 0
    %87 = vperm.xlu0 %86, %v61
    %v88 = vpop.permute.xlu0 %87
    %91 = vset.pattern.permute.xlu0 0
    %92 = vperm.xlu0 %91, %v62
    %v93 = vpop.permute.xlu0 %92
    %96 = vset.pattern.permute.xlu0 0
    %97 = vperm.xlu0 %96, %v63
    %v98 = vpop.permute.xlu0 %97
    %101 = vset.pattern.permute.xlu0 0
    %102 = vperm.xlu0 %101, %v64
    %v103 = vpop.permute.xlu0 %102
    %106 = vset.pattern.permute.xlu0 0
    %107 = vperm.xlu0 %106, %v65
    %v108 = vpop.permute.xlu0 %107
    %111 = vset.pattern.permute.xlu0 0
    %112 = vperm.xlu0 %111, %v66
    %v113 = vpop.permute.xlu0 %112
    %116 = vset.pattern.permute.xlu0 0
    %117 = vperm.xlu0 %116, %v67
    %v118 = vpop.permute.xlu0 %117
    %121 = vset.pattern.permute.xlu0 0
    %122 = vperm.xlu0 %121, %v68
    %v123 = vpop.permute.xlu0 %122
    %126 = vset.pattern.permute.xlu0 0
    %127 = vperm.xlu0 %126, %v69
    %v128 = vpop.permute.xlu0 %127
    %131 = vset.pattern.permute.xlu0 0
    %132 = vperm.xlu0 %131, %v70
    %v133 = vpop.permute.xlu0 %132
    %136 = vset.pattern.permute.xlu0 0
    %137 = vperm.xlu0 %136, %v71
    %v138 = vpop.permute.xlu0 %137
    %141 = vset.pattern.permute.xlu0 0
    %142 = vperm.xlu0 %141, %v72
    %v143 = vpop.permute.xlu0 %142
    %146 = vset.pattern.permute.xlu0 0
    %147 = vperm.xlu0 %146, %v73
    %v148 = vpop.permute.xlu0 %147
    %151 = vset.pattern.permute.xlu0 0
    %152 = vperm.xlu0 %151, %v74
    %v153 = vpop.permute.xlu0 %152
    %v171 = vunpack.c.l.b16 %v43
    %v172 = vunpack.c.l.b16 %v44
    %v173 = vunpack.c.l.b16 %v45
    %v174 = vunpack.c.l.b16 %v46
    %v175 = vunpack.c.l.b16 %v47
    %v176 = vunpack.c.l.b16 %v48
    %v177 = vunpack.c.l.b16 %v49
    %v178 = vunpack.c.l.b16 %v50
    %v179 = vunpack.c.l.b16 %v51
    %v180 = vunpack.c.l.b16 %v52
    %v181 = vunpack.c.l.b16 %v53
    %v182 = vunpack.c.l.b16 %v54
    %v183 = vunpack.c.l.b16 %v55
    %v184 = vunpack.c.l.b16 %v56
    %v185 = vunpack.c.l.b16 %v57
    %v186 = vunpack.c.l.b16 %v58
    %v187 = vpack.c.b16 %v172, %v171
    %v188 = vpack.c.b16 %v174, %v173
    %v189 = vpack.c.b16 %v176, %v175
    %v190 = vpack.c.b16 %v178, %v177
    %v191 = vpack.c.b16 %v180, %v179
    %v192 = vpack.c.b16 %v182, %v181
    %v193 = vpack.c.b16 %v184, %v183
    %v194 = vpack.c.b16 %v186, %v185
    %v196 = vunpack.c.l.b16 %v42
    %v197 = vunpack.c.h.b16 %v42
    %v198 = vpack.c.b16 %v196, %v196
    %v199 = vpack.c.b16 %v197, %v197
    %vm200 = vcmask 64512
    %v202 = vsel %vm200, %v187, 0
    %v205 = vsel %vm200, %v188, 0
    %v208 = vsel %vm200, %v189, 0
    %v211 = vsel %vm200, %v190, 0
    %v214 = vsel %vm200, %v191, 0
    %v217 = vsel %vm200, %v192, 0
    %v220 = vsel %vm200, %v193, 0
    %v223 = vsel %vm200, %v194, 0
    %vm225 = vcmask 1043456
    %v227 = vsel %vm225, %v198, 0
    %v230 = vsel %vm225, %v199, 0
    %232 = vmatprep.subr.bf16.mxu0 %v230
    %233 = vmatpush1.bf16.msra.mxu0 %v227
    %234 = vmatprep.subr.bf16.mxu0 0
    %235 = vmatpush1.bf16.msra.mxu0 0
    %236 = vmatprep.subr.bf16.mxu0 0
    %237 = vmatpush1.bf16.msra.mxu0 0
    %238 = vmatprep.subr.bf16.mxu0 0
    %239 = vmatpush1.bf16.msra.mxu0 0
    %240 = vmatprep.subr.bf16.mxu0 0
    %241 = vmatpush1.bf16.msra.mxu0 0
    %242 = vmatprep.subr.bf16.mxu0 0
    %243 = vmatpush1.bf16.msra.mxu0 0
    %244 = vmatprep.subr.bf16.mxu0 0
    %245 = vmatpush1.bf16.msra.mxu0 0
    %246 = vmatprep.subr.bf16.mxu0 0
    %247 = vmatpush1.bf16.msra.mxu0 0
    %248 = vmatprep.subr.bf16.mxu0 0
    %249 = vmatpush1.bf16.msra.mxu0 0
    %250 = vmatprep.subr.bf16.mxu0 0
    %251 = vmatpush1.bf16.msra.mxu0 0
    %252 = vmatprep.subr.bf16.mxu0 0
    %253 = vmatpush1.bf16.msra.mxu0 0
    %254 = vmatprep.subr.bf16.mxu0 0
    %255 = vmatpush1.bf16.msra.mxu0 0
    %256 = vmatprep.subr.bf16.mxu0 0
    %257 = vmatpush1.bf16.msra.mxu0 0
    %258 = vmatprep.subr.bf16.mxu0 0
    %259 = vmatpush1.bf16.msra.mxu0 0
    %260 = vmatprep.subr.bf16.mxu0 0
    %261 = vmatpush1.bf16.msra.mxu0 0
    %262 = vmatprep.subr.bf16.mxu0 0
    %263 = vmatpush1.bf16.msra.mxu0 0
    %264 = vmatprep.mubr.bf16.mxu0 0
    %265 = vmatmul.mubr.bf16.gmra.mrb[0].mxu0 %v202
    %v266 = vpop.f32.mrb[0].mxu0
    %v267 = vadd.f32 %v78, %v266
    %v268 = vpop.f32.mrb[0].mxu0
    %v269 = vadd.f32 %v78, %v268
    %v270 = vpop.f32.mrb[0].mxu0
    %v271 = vadd.f32 %v83, %v270
    %v272 = vpop.f32.mrb[0].mxu0
    %v273 = vadd.f32 %v83, %v272
    %274 = vmatprep.mubr.bf16.mxu0 0
    %275 = vmatmul.mubr.bf16.gmra.mrb[0].mxu0 %v205
    %v276 = vpop.f32.mrb[0].mxu0
    %v277 = vadd.f32 %v88, %v276
    %v278 = vpop.f32.mrb[0].mxu0
    %v279 = vadd.f32 %v88, %v278
    %v280 = vpop.f32.mrb[0].mxu0
    %v281 = vadd.f32 %v93, %v280
    %v282 = vpop.f32.mrb[0].mxu0
    %v283 = vadd.f32 %v93, %v282
    %284 = vmatprep.mubr.bf16.mxu0 0
    %285 = vmatmul.mubr.bf16.gmra.mrb[0].mxu0 %v208
    %v286 = vpop.f32.mrb[0].mxu0
    %v287 = vadd.f32 %v98, %v286
    %v288 = vpop.f32.mrb[0].mxu0
    %v289 = vadd.f32 %v98, %v288
    %v290 = vpop.f32.mrb[0].mxu0
    %v291 = vadd.f32 %v103, %v290
    %v292 = vpop.f32.mrb[0].mxu0
    %v293 = vadd.f32 %v103, %v292
    %294 = vmatprep.mubr.bf16.mxu0 0
    %295 = vmatmul.mubr.bf16.gmra.mrb[0].mxu0 %v211
    %v296 = vpop.f32.mrb[0].mxu0
    %v297 = vadd.f32 %v108, %v296
    %v298 = vpop.f32.mrb[0].mxu0
    %v299 = vadd.f32 %v108, %v298
    %v300 = vpop.f32.mrb[0].mxu0
    %v301 = vadd.f32 %v113, %v300
    %v302 = vpop.f32.mrb[0].mxu0
    %v303 = vadd.f32 %v113, %v302
    %304 = vmatprep.mubr.bf16.mxu0 0
    %305 = vmatmul.mubr.bf16.gmra.mrb[0].mxu0 %v214
    %v306 = vpop.f32.mrb[0].mxu0
    %v307 = vadd.f32 %v118, %v306
    %v308 = vpop.f32.mrb[0].mxu0
    %v309 = vadd.f32 %v118, %v308
    %v310 = vpop.f32.mrb[0].mxu0
    %v311 = vadd.f32 %v123, %v310
    %v312 = vpop.f32.mrb[0].mxu0
    %v313 = vadd.f32 %v123, %v312
    %314 = vmatprep.mubr.bf16.mxu0 0
    %315 = vmatmul.mubr.bf16.gmra.mrb[0].mxu0 %v217
    %v316 = vpop.f32.mrb[0].mxu0
    %v317 = vadd.f32 %v128, %v316
    %v318 = vpop.f32.mrb[0].mxu0
    %v319 = vadd.f32 %v128, %v318
    %v320 = vpop.f32.mrb[0].mxu0
    %v321 = vadd.f32 %v133, %v320
    %v322 = vpop.f32.mrb[0].mxu0
    %v323 = vadd.f32 %v133, %v322
    %324 = vmatprep.mubr.bf16.mxu0 0
    %325 = vmatmul.mubr.bf16.gmra.mrb[0].mxu0 %v220
    %v326 = vpop.f32.mrb[0].mxu0
    %v327 = vadd.f32 %v138, %v326
    %v328 = vpop.f32.mrb[0].mxu0
    %v329 = vadd.f32 %v138, %v328
    %v330 = vpop.f32.mrb[0].mxu0
    %v331 = vadd.f32 %v143, %v330
    %v332 = vpop.f32.mrb[0].mxu0
    %v333 = vadd.f32 %v143, %v332
    %334 = vmatprep.mubr.bf16.mxu0 0
    %335 = vmatmul.mubr.bf16.gmra.mrb[0].mxu0 %v223
    %v336 = vpop.f32.mrb[0].mxu0
    %v337 = vadd.f32 %v148, %v336
    %v338 = vpop.f32.mrb[0].mxu0
    %v339 = vadd.f32 %v148, %v338
    %v340 = vpop.f32.mrb[0].mxu0
    %v341 = vadd.f32 %v153, %v340
    %v342 = vpop.f32.mrb[0].mxu0
    %v343 = vadd.f32 %v153, %v342
    %344 = vdwg.mxu0
    %v345 = vld [vmem:[%s3] sm:$0xf]
    %v346 = vld [vmem:[%s3 + $0x4] sm:$0xf]
    %v347 = vld [vmem:[%s3 + $0x8] sm:$0xf]
    %v348 = vld [vmem:[%s3 + $0xc] sm:$0xf]
    %v349 = vld [vmem:[%s3 + $0x10] sm:$0xf]
    %v350 = vld [vmem:[%s3 + $0x14] sm:$0xf]
    %v351 = vld [vmem:[%s3 + $0x18] sm:$0xf]
    %v352 = vld [vmem:[%s3 + $0x1c] sm:$0xf]
    %v353 = vpack.c.bf16 %v271, %v267
    %v354 = vpack.c.bf16 %v273, %v269
    %v355 = vpack.c.bf16 %v281, %v277
    %v356 = vpack.c.bf16 %v283, %v279
    %v357 = vpack.c.bf16 %v291, %v287
    %v358 = vpack.c.bf16 %v293, %v289
    %v359 = vpack.c.bf16 %v301, %v297
    %v360 = vpack.c.bf16 %v303, %v299
    %v361 = vpack.c.bf16 %v311, %v307
    %v362 = vpack.c.bf16 %v313, %v309
    %v363 = vpack.c.bf16 %v321, %v317
    %v364 = vpack.c.bf16 %v323, %v319
    %v365 = vpack.c.bf16 %v331, %v327
    %v366 = vpack.c.bf16 %v333, %v329
    %v367 = vpack.c.bf16 %v341, %v337
    %v368 = vpack.c.bf16 %v343, %v339
    %v369 = vld [vmem:[%s4] sm:$0xff]
    %v370 = vld [vmem:[%s4 + $0x8] sm:$0xff]
    %v371 = vld [vmem:[%s4 + $0x10] sm:$0xff]
    %v372 = vld [vmem:[%s4 + $0x18] sm:$0xff]
    %v373 = vld [vmem:[%s4 + $0x20] sm:$0xff]
    %v374 = vld [vmem:[%s4 + $0x28] sm:$0xff]
    %v375 = vld [vmem:[%s4 + $0x30] sm:$0xff]
    %v376 = vld [vmem:[%s4 + $0x38] sm:$0xff]
    %378 = vset.pattern.permute.xlu0 0
    %379 = vperm.xlu0 %378, %v369
    %v380 = vpop.permute.xlu0 %379
    %383 = vset.pattern.permute.xlu0 0
    %384 = vperm.xlu0 %383, %v370
    %v385 = vpop.permute.xlu0 %384
    %388 = vset.pattern.permute.xlu0 0
    %389 = vperm.xlu0 %388, %v371
    %v390 = vpop.permute.xlu0 %389
    %393 = vset.pattern.permute.xlu0 0
    %394 = vperm.xlu0 %393, %v372
    %v395 = vpop.permute.xlu0 %394
    %398 = vset.pattern.permute.xlu0 0
    %399 = vperm.xlu0 %398, %v373
    %v400 = vpop.permute.xlu0 %399
    %403 = vset.pattern.permute.xlu0 0
    %404 = vperm.xlu0 %403, %v374
    %v405 = vpop.permute.xlu0 %404
    %408 = vset.pattern.permute.xlu0 0
    %409 = vperm.xlu0 %408, %v375
    %v410 = vpop.permute.xlu0 %409
    %413 = vset.pattern.permute.xlu0 0
    %414 = vperm.xlu0 %413, %v376
    %v415 = vpop.permute.xlu0 %414
    %v425 = vunpack.c.l.b16 %v345
    %v426 = vunpack.c.l.b16 %v346
    %v427 = vunpack.c.l.b16 %v347
    %v428 = vunpack.c.l.b16 %v348
    %v429 = vunpack.c.l.b16 %v349
    %v430 = vunpack.c.l.b16 %v350
    %v431 = vunpack.c.l.b16 %v351
    %v432 = vunpack.c.l.b16 %v352
    %v433 = vpack.c.b16 %v426, %v425
    %v434 = vpack.c.b16 %v428, %v427
    %v435 = vpack.c.b16 %v430, %v429
    %v436 = vpack.c.b16 %v432, %v431
    %441 = vmatprep.subr.bf16.mxu0 %v354
    %442 = vmatpush1.bf16.msra.mxu0 %v353
    %443 = vmatprep.subr.bf16.mxu0 %v356
    %444 = vmatpush1.bf16.msra.mxu0 %v355
    %445 = vmatprep.subr.bf16.mxu0 %v358
    %446 = vmatpush1.bf16.msra.mxu0 %v357
    %447 = vmatprep.subr.bf16.mxu0 %v360
    %448 = vmatpush1.bf16.msra.mxu0 %v359
    %449 = vmatprep.subr.bf16.mxu0 %v362
    %450 = vmatpush1.bf16.msra.mxu0 %v361
    %451 = vmatprep.subr.bf16.mxu0 %v364
    %452 = vmatpush1.bf16.msra.mxu0 %v363
    %453 = vmatprep.subr.bf16.mxu0 %v366
    %454 = vmatpush1.bf16.msra.mxu0 %v365
    %455 = vmatprep.subr.bf16.mxu0 %v368
    %456 = vmatpush1.bf16.msra.mxu0 %v367
    %457 = vmatprep.subr.bf16.mxu0 0
    %458 = vmatpush1.bf16.msra.mxu0 0
    %459 = vmatprep.subr.bf16.mxu0 0
    %460 = vmatpush1.bf16.msra.mxu0 0
    %461 = vmatprep.subr.bf16.mxu0 0
    %462 = vmatpush1.bf16.msra.mxu0 0
    %463 = vmatprep.subr.bf16.mxu0 0
    %464 = vmatpush1.bf16.msra.mxu0 0
    %465 = vmatprep.subr.bf16.mxu0 0
    %466 = vmatpush1.bf16.msra.mxu0 0
    %467 = vmatprep.subr.bf16.mxu0 0
    %468 = vmatpush1.bf16.msra.mxu0 0
    %469 = vmatprep.subr.bf16.mxu0 0
    %470 = vmatpush1.bf16.msra.mxu0 0
    %471 = vmatprep.subr.bf16.mxu0 0
    %472 = vmatpush1.bf16.msra.mxu0 0
    %473 = vmatprep.mubr.bf16.mxu0 0
    %474 = vmatmul.mubr.bf16.gmra.mrb[0].mxu0 %v433
    %v475 = vpop.f32.mrb[0].mxu0
    %v476 = vadd.f32 %v380, %v475
    %v477 = vpop.f32.mrb[0].mxu0
    %v478 = vadd.f32 %v380, %v477
    %v479 = vpop.f32.mrb[0].mxu0
    %v480 = vadd.f32 %v385, %v479
    %v481 = vpop.f32.mrb[0].mxu0
    %v482 = vadd.f32 %v385, %v481
    %483 = vmatprep.mubr.bf16.mxu0 0
    %484 = vmatmul.mubr.bf16.gmra.mrb[0].mxu0 %v434
    %v485 = vpop.f32.mrb[0].mxu0
    %v486 = vadd.f32 %v390, %v485
    %v487 = vpop.f32.mrb[0].mxu0
    %v488 = vadd.f32 %v390, %v487
    %v489 = vpop.f32.mrb[0].mxu0
    %v490 = vadd.f32 %v395, %v489
    %v491 = vpop.f32.mrb[0].mxu0
    %v492 = vadd.f32 %v395, %v491
    %493 = vmatprep.mubr.bf16.mxu0 0
    %494 = vmatmul.mubr.bf16.gmra.mrb[0].mxu0 %v435
    %v495 = vpop.f32.mrb[0].mxu0
    %v496 = vadd.f32 %v400, %v495
    %v497 = vpop.f32.mrb[0].mxu0
    %v498 = vadd.f32 %v400, %v497
    %v499 = vpop.f32.mrb[0].mxu0
    %v500 = vadd.f32 %v405, %v499
    %v501 = vpop.f32.mrb[0].mxu0
    %v502 = vadd.f32 %v405, %v501
    %503 = vmatprep.mubr.bf16.mxu0 0
    %504 = vmatmul.mubr.bf16.gmra.mrb[0].mxu0 %v436
    %v505 = vpop.f32.mrb[0].mxu0
    %v506 = vadd.f32 %v410, %v505
    %v507 = vpop.f32.mrb[0].mxu0
    %v508 = vadd.f32 %v410, %v507
    %v509 = vpop.f32.mrb[0].mxu0
    %v510 = vadd.f32 %v415, %v509
    %v511 = vpop.f32.mrb[0].mxu0
    %v512 = vadd.f32 %v415, %v511
    %513 = vdwg.mxu0
    %v514 = vmax.f32 %v476, 0.0
    %v515 = vmax.f32 %v478, 0.0
    %v516 = vmax.f32 %v480, 0.0
    %v517 = vmax.f32 %v482, 0.0
    %v518 = vmax.f32 %v486, 0.0
    %v519 = vmax.f32 %v488, 0.0
    %v520 = vmax.f32 %v490, 0.0
    %v521 = vmax.f32 %v492, 0.0
    %v522 = vmax.f32 %v496, 0.0
    %v523 = vmax.f32 %v498, 0.0
    %v524 = vmax.f32 %v500, 0.0
    %v525 = vmax.f32 %v502, 0.0
    %v526 = vmax.f32 %v506, 0.0
    %v527 = vmax.f32 %v508, 0.0
    %v528 = vmax.f32 %v510, 0.0
    %v529 = vmax.f32 %v512, 0.0
    %v530 = vld [vmem:[%s5] sm:$0xf]
    %v531 = vld [vmem:[%s5 + $0x4] sm:$0xf]
    %v532 = vld [vmem:[%s5 + $0x8] sm:$0xf]
    %v533 = vld [vmem:[%s5 + $0xc] sm:$0xf]
    %v534 = vpack.c.bf16 %v516, %v514
    %v535 = vpack.c.bf16 %v517, %v515
    %v536 = vpack.c.bf16 %v520, %v518
    %v537 = vpack.c.bf16 %v521, %v519
    %v538 = vpack.c.bf16 %v524, %v522
    %v539 = vpack.c.bf16 %v525, %v523
    %v540 = vpack.c.bf16 %v528, %v526
    %v541 = vpack.c.bf16 %v529, %v527
    %v542 = vld [vmem:[%s6] sm:$0xff]
    %v543 = vld [vmem:[%s6 + $0x8] sm:$0xff]
    %v544 = vld [vmem:[%s6 + $0x10] sm:$0xff]
    %v545 = vld [vmem:[%s6 + $0x18] sm:$0xff]
    %547 = vset.pattern.permute.xlu0 0
    %548 = vperm.xlu0 %547, %v542
    %v549 = vpop.permute.xlu0 %548
    %552 = vset.pattern.permute.xlu0 0
    %553 = vperm.xlu0 %552, %v543
    %v554 = vpop.permute.xlu0 %553
    %557 = vset.pattern.permute.xlu0 0
    %558 = vperm.xlu0 %557, %v544
    %v559 = vpop.permute.xlu0 %558
    %562 = vset.pattern.permute.xlu0 0
    %563 = vperm.xlu0 %562, %v545
    %v564 = vpop.permute.xlu0 %563
    %v570 = vunpack.c.l.b16 %v530
    %v571 = vunpack.c.l.b16 %v531
    %v572 = vunpack.c.l.b16 %v532
    %v573 = vunpack.c.l.b16 %v533
    %v574 = vpack.c.b16 %v571, %v570
    %v575 = vpack.c.b16 %v573, %v572
    %vm576 = vcmask 523264
    %v578 = vsel %vm576, %v574, 0
    %v581 = vsel %vm576, %v575, 0
    %583 = vmatprep.subr.bf16.mxu0 %v535
    %584 = vmatpush1.bf16.msra.mxu0 %v534
    %585 = vmatprep.subr.bf16.mxu0 %v537
    %586 = vmatpush1.bf16.msra.mxu0 %v536
    %587 = vmatprep.subr.bf16.mxu0 %v539
    %588 = vmatpush1.bf16.msra.mxu0 %v538
    %589 = vmatprep.subr.bf16.mxu0 %v541
    %590 = vmatpush1.bf16.msra.mxu0 %v540
    %591 = vmatprep.subr.bf16.mxu0 0
    %592 = vmatpush1.bf16.msra.mxu0 0
    %593 = vmatprep.subr.bf16.mxu0 0
    %594 = vmatpush1.bf16.msra.mxu0 0
    %595 = vmatprep.subr.bf16.mxu0 0
    %596 = vmatpush1.bf16.msra.mxu0 0
    %597 = vmatprep.subr.bf16.mxu0 0
    %598 = vmatpush1.bf16.msra.mxu0 0
    %599 = vmatprep.subr.bf16.mxu0 0
    %600 = vmatpush1.bf16.msra.mxu0 0
    %601 = vmatprep.subr.bf16.mxu0 0
    %602 = vmatpush1.bf16.msra.mxu0 0
    %603 = vmatprep.subr.bf16.mxu0 0
    %604 = vmatpush1.bf16.msra.mxu0 0
    %605 = vmatprep.subr.bf16.mxu0 0
    %606 = vmatpush1.bf16.msra.mxu0 0
    %607 = vmatprep.subr.bf16.mxu0 0
    %608 = vmatpush1.bf16.msra.mxu0 0
    %609 = vmatprep.subr.bf16.mxu0 0
    %610 = vmatpush1.bf16.msra.mxu0 0
    %611 = vmatprep.subr.bf16.mxu0 0
    %612 = vmatpush1.bf16.msra.mxu0 0
    %613 = vmatprep.subr.bf16.mxu0 0
    %614 = vmatpush1.bf16.msra.mxu0 0
    %615 = vmatprep.mubr.bf16.mxu0 0
    %616 = vmatmul.mubr.bf16.gmra.mrb[0].mxu0 %v578
    %v617 = vpop.f32.mrb[0].mxu0
    %v618 = vadd.f32 %v549, %v617
    %v619 = vpop.f32.mrb[0].mxu0
    %v620 = vadd.f32 %v549, %v619
    %v621 = vpop.f32.mrb[0].mxu0
    %v622 = vadd.f32 %v554, %v621
    %v623 = vpop.f32.mrb[0].mxu0
    %v624 = vadd.f32 %v554, %v623
    %625 = vmatprep.mubr.bf16.mxu0 0
    %626 = vmatmul.mubr.bf16.gmra.mrb[0].mxu0 %v581
    %v627 = vpop.f32.mrb[0].mxu0
    %v628 = vadd.f32 %v559, %v627
    %v629 = vpop.f32.mrb[0].mxu0
    %v630 = vadd.f32 %v559, %v629
    %v631 = vpop.f32.mrb[0].mxu0
    %v632 = vadd.f32 %v564, %v631
    %v633 = vpop.f32.mrb[0].mxu0
    %v634 = vadd.f32 %v564, %v633
    %635 = vdwg.mxu0
    %v636 = vmax.f32 %v618, 0.0
    %v637 = vmax.f32 %v620, 0.0
    %v638 = vmax.f32 %v622, 0.0
    %v639 = vmax.f32 %v624, 0.0
    %v640 = vmax.f32 %v628, 0.0
    %v641 = vmax.f32 %v630, 0.0
    %v642 = vmax.f32 %v632, 0.0
    %v643 = vmax.f32 %v634, 0.0
    %v644 = vld [vmem:[%s7] sm:$0xf]
    %v645 = vld [vmem:[%s7 + $0x4] sm:$0xf]
    %v646 = vpack.c.bf16 %v638, %v636
    %v647 = vpack.c.bf16 %v639, %v637
    %v648 = vpack.c.bf16 %v642, %v640
    %v649 = vpack.c.bf16 %v643, %v641
    %v650 = vld [vmem:[%s8] sm:$0xff]
    %v651 = vld [vmem:[%s8 + $0x8] sm:$0xff]
    %653 = vset.pattern.permute.xlu0 0
    %654 = vperm.xlu0 %653, %v650
    %v655 = vpop.permute.xlu0 %654
    %658 = vset.pattern.permute.xlu0 0
    %659 = vperm.xlu0 %658, %v651
    %v660 = vpop.permute.xlu0 %659
    %v664 = vunpack.c.l.b16 %v644
    %v665 = vunpack.c.l.b16 %v645
    %v666 = vpack.c.b16 %v665, %v664
    %vm667 = vcmask 261120
    %v669 = vsel %vm667, %v666, 0
    %671 = vmatprep.subr.bf16.mxu0 %v647
    %672 = vmatpush1.bf16.msra.mxu0 %v646
    %673 = vmatprep.subr.bf16.mxu0 %v649
    %674 = vmatpush1.bf16.msra.mxu0 %v648
    %675 = vmatprep.subr.bf16.mxu0 0
    %676 = vmatpush1.bf16.msra.mxu0 0
    %677 = vmatprep.subr.bf16.mxu0 0
    %678 = vmatpush1.bf16.msra.mxu0 0
    %679 = vmatprep.subr.bf16.mxu0 0
    %680 = vmatpush1.bf16.msra.mxu0 0
    %681 = vmatprep.subr.bf16.mxu0 0
    %682 = vmatpush1.bf16.msra.mxu0 0
    %683 = vmatprep.subr.bf16.mxu0 0
    %684 = vmatpush1.bf16.msra.mxu0 0
    %685 = vmatprep.subr.bf16.mxu0 0
    %686 = vmatpush1.bf16.msra.mxu0 0
    %687 = vmatprep.subr.bf16.mxu0 0
    %688 = vmatpush1.bf16.msra.mxu0 0
    %689 = vmatprep.subr.bf16.mxu0 0
    %690 = vmatpush1.bf16.msra.mxu0 0
    %691 = vmatprep.subr.bf16.mxu0 0
    %692 = vmatpush1.bf16.msra.mxu0 0
    %693 = vmatprep.subr.bf16.mxu0 0
    %694 = vmatpush1.bf16.msra.mxu0 0
    %695 = vmatprep.subr.bf16.mxu0 0
    %696 = vmatpush1.bf16.msra.mxu0 0
    %697 = vmatprep.subr.bf16.mxu0 0
    %698 = vmatpush1.bf16.msra.mxu0 0
    %699 = vmatprep.subr.bf16.mxu0 0
    %700 = vmatpush1.bf16.msra.mxu0 0
    %701 = vmatprep.subr.bf16.mxu0 0
    %702 = vmatpush1.bf16.msra.mxu0 0
    %703 = vmatprep.mubr.bf16.mxu0 0
    %704 = vmatmul.mubr.bf16.gmra.mrb[0].mxu0 %v669
    %v705 = vpop.f32.mrb[0].mxu0
    %v706 = vadd.f32 %v655, %v705
    %v707 = vpop.f32.mrb[0].mxu0
    %v708 = vadd.f32 %v655, %v707
    %v709 = vpop.f32.mrb[0].mxu0
    %v710 = vadd.f32 %v660, %v709
    %v711 = vpop.f32.mrb[0].mxu0
    %v712 = vadd.f32 %v660, %v711
    %713 = vdwg.mxu0
    %v714 = vmax.f32 %v706, 0.0
    %v715 = vmax.f32 %v708, 0.0
    %v716 = vmax.f32 %v710, 0.0
    %v717 = vmax.f32 %v712, 0.0
    %v718 = vld [vmem:[%s9] sm:$0x1]
    %v719 = vpack.c.bf16 %v716, %v714
    %v720 = vpack.c.bf16 %v717, %v715
    %v721 = vld [vmem:[#allocation2] sm:$0x1]
    %723 = vset.pattern.permute.xlu0 0
    %724 = vperm.xlu0 %723, %v721
    %v725 = vpop.permute.xlu0 %724
    %v727 = vlaneseq
    %v728 = vshrl.u32 %v727, 7
    %v729 = vsub.s32 0, %v728
    %v730 = vrot.slane %v725, %v729
    %vm731 = vcmask 130048
    %v733 = vsel %vm731, %v718, 0
    %735 = vmatprep.subr.bf16.mxu0 %v720
    %736 = vmatpush1.bf16.msra.mxu0 %v719
    %737 = vmatprep.subr.bf16.mxu0 0
    %738 = vmatpush1.bf16.msra.mxu0 0
    %739 = vmatprep.subr.bf16.mxu0 0
    %740 = vmatpush1.bf16.msra.mxu0 0
    %741 = vmatprep.subr.bf16.mxu0 0
    %742 = vmatpush1.bf16.msra.mxu0 0
    %743 = vmatprep.subr.bf16.mxu0 0
    %744 = vmatpush1.bf16.msra.mxu0 0
    %745 = vmatprep.subr.bf16.mxu0 0
    %746 = vmatpush1.bf16.msra.mxu0 0
    %747 = vmatprep.subr.bf16.mxu0 0
    %748 = vmatpush1.bf16.msra.mxu0 0
    %749 = vmatprep.subr.bf16.mxu0 0
    %750 = vmatpush1.bf16.msra.mxu0 0
    %751 = vmatprep.subr.bf16.mxu0 0
    %752 = vmatpush1.bf16.msra.mxu0 0
    %753 = vmatprep.subr.bf16.mxu0 0
    %754 = vmatpush1.bf16.msra.mxu0 0
    %755 = vmatprep.subr.bf16.mxu0 0
    %756 = vmatpush1.bf16.msra.mxu0 0
    %757 = vmatprep.subr.bf16.mxu0 0
    %758 = vmatpush1.bf16.msra.mxu0 0
    %759 = vmatprep.subr.bf16.mxu0 0
    %760 = vmatpush1.bf16.msra.mxu0 0
    %761 = vmatprep.subr.bf16.mxu0 0
    %762 = vmatpush1.bf16.msra.mxu0 0
    %763 = vmatprep.subr.bf16.mxu0 0
    %764 = vmatpush1.bf16.msra.mxu0 0
    %765 = vmatprep.subr.bf16.mxu0 0
    %766 = vmatpush1.bf16.msra.mxu0 0
    %767 = vmatprep.mubr.bf16.mxu0 0
    %768 = vmatmul.mubr.bf16.gmra.mrb[0].mxu0 %v733
    %v769 = vpop.f32.mrb[0].mxu0
    %v770 = vadd.f32 %v730, %v769
    %v771 = vpop.f32.mrb[0].mxu0
    %v772 = vadd.f32 %v730, %v771
    %v773 = vpop.f32.mrb[0].mxu0
    %v774 = vpop.f32.mrb[0].mxu0
    %775 = vdwg.mxu0
    %v776 = vsub.f32 0.0, %v770
    %v777 = vsub.f32 0.0, %v772
    %v778 = vmul.f32 %v776, 1.442695
    %v779 = vpow.pop %v778
    %v780 = vmul.f32 %v777, 1.442695
    %v781 = vpow.pop %v780
    %v782 = vadd.f32 %v779, 1.0
    %v783 = vadd.f32 %v781, 1.0
    %v784 = vrcp.pop %v782
    %v785 = vrcp.pop %v783
    %v788 = vcombine.low %v784, %v785
    %v790 = vunpack.c.l.s4 1966171168
    %v791 = vunpack.c.0.s8 %v790
    %v792 = vlaneseq
    %v793 = vshrl.u32 %v792, 7
    %v794 = vsub.s32 %v791, %v793
    %v795 = vrot.slane %v788, %v794
    %v797 = vunpack.c.l.s4 1966171168
    %v798 = vunpack.c.0.s8 %v797
    %v799 = vlaneseq
    %v800 = vshrl.u32 %v799, 7
    %v801 = vsub.s32 %v798, %v800
    %v802 = vrot.slane %v795, %v801
    %v804 = vlaneseq
    %vm805 = vcmp.ge.s32.totalorder %v804, 0
    %vm806 = vcmp.lt.s32.totalorder %v804, 256
    %vm807 = vmand %vm805, %vm806
    %808 = vst.msk [vmem:[#allocation3] sm:$0x3] %vm807, %v802
    // Predicated region
    $region46: #{tpu_custom_call.1} parent=1 // pred_check
      _
    $region47: #{tpu_custom_call.1} parent=1 // pred_check_branch
      %810 = sbr.rel (0) target = $region49
    $region48: #{tpu_custom_call.1} parent=1 // pred_region
      %s812 = ssub.s32 32, 32
      %813 = vsyncadd [#allocation4], %s812
      %s815 = sshll.u32 [#allocation3], 4
      %s816 = int_to_ptr.vmem [resolvable:$true] %s815
      %818 = dma.vmem_to_hbm [thread:$0]  %s816, 32, %s11, [#allocation4]
    $region49: #{tpu_custom_call.1} parent=1 // pred_fallthru
      _
    // Predicated region
    $region50: #{tpu_custom_call.1} parent=1 // pred_check
      _
    $region51: #{tpu_custom_call.1} parent=1 // pred_check_branch
      %820 = sbr.rel (0) target = $region53
    $region52: #{tpu_custom_call.1} parent=1 // pred_region
      %821 = dma.done [#allocation4], 32
    $region53: #{tpu_custom_call.1} parent=1 // pred_fallthru
      _
    %822 = vsyncpa [#allocation4], 1

</llo_original>
